<compile_context>
chip_gen: v7x
topology: tpu7x:2x2x1
jax: 0.10.0
libtpu: 0.0.40
codegen_flags: <defaults>
</compile_context>

<pallas_src>
import functools

import numpy as np
import jax
import jax.numpy as jnp
from jax.experimental import pallas as pl
from jax.experimental.pallas import tpu as pltpu


def _round_up(x, m):
    return ((x + m - 1) // m) * m


def _ffl_kernel(p_ref, t_ref, dft_ref, out_ref, *, lp, alpha, log_matrix):
    """One grid step = TB flattened tiles (rows) of pred and target.

    p_ref, t_ref: (TB, Lp) f32 — each row is one (n, patch, c) tile flattened
    to ph*pw (zero-padded to Lp, a multiple of 128).
    dft_ref: (Lp, 2*Lp) f32 — [Re(F_h (x) F_w) | Im(F_h (x) F_w)] * 1/sqrt(HW).
    out_ref: (1, 128) f32 — this block's partial loss sum (broadcast).
    """
    d = p_ref[...] - t_ref[...]                       # F(p) - F(t) == F(p - t)
    f = jnp.dot(d, dft_ref[...], preferred_element_type=jnp.float32)  # (TB, 2*Lp)
    fr = f[:, :lp]
    fi = f[:, lp:]
    d2 = fr * fr + fi * fi                            # freq_distance per element

    w = jnp.sqrt(d2)                                  # weight before normalization
    if alpha != 1.0:
        w = w ** alpha
    if log_matrix:
        w = jnp.log(w + 1.0)

    # batch_matrix=False: per-tile (per-row) normalization by max over (h, w).
    # Since 0 <= w/max <= 1, the reference clamp is a no-op, so per-tile loss
    # contribution is sum(w * d2) / max(w); max == 0 (identical tile) gives 0,
    # matching the reference's NaN->0 rule.  Zero-padded rows/lanes contribute 0.
    m = jnp.max(w, axis=-1, keepdims=True)            # (TB, 1)
    s = jnp.sum(w * d2, axis=-1, keepdims=True)       # (TB, 1)
    contrib = jnp.where(m > 0.0, s * pl.reciprocal(m, approx=True), 0.0)

    out_ref[...] = jnp.zeros(out_ref.shape, jnp.float32) + jnp.sum(contrib)


def focal_frequency_loss(pred, target, *, loss_weight=1.0, alpha=1.0,
                         patch_factor=1, log_matrix=False):
    N, C, H, W = pred.shape
    pf = patch_factor
    assert H % pf == 0 and W % pf == 0
    ph, pw = H // pf, W // pf
    L = ph * pw
    # TODO(synk): ave_spectrum=True and batch_matrix=True are not implemented
    # (the module defaults, False, are reproduced).
    # TODO(synk): tiles larger than 32x32 need a separable two-stage DFT; the
    # Kronecker DFT matrix below is (ph*pw)^2 and only practical for small tiles.
    assert L <= 1024, "Kronecker-DFT path supports patch sizes up to 32x32"

    B = N * pf * pf * C
    Lp = _round_up(L, 128)                 # lane-dense row length
    TB = min(_round_up(B, 8), 512)         # tiles per grid step
    Bp = _round_up(B, TB)
    G = Bp // TB

    def to_rows(x):
        # patch_factor == 1: pure reshape of NCHW (no data movement).
        # TODO(synk): for patch_factor > 1 the patch gather could be folded
        # into the BlockSpec index_map to avoid this extra HBM pass.
        y = x.reshape(N, C, pf, ph, pf, pw).transpose(0, 2, 4, 1, 3, 5)
        y = y.reshape(B, L).astype(jnp.float32)
        return jnp.pad(y, ((0, Bp - B), (0, Lp - L)))

    p = to_rows(pred)
    t = to_rows(target)

    # 2-D ortho DFT as one Kronecker matrix: for a flattened tile v (h-major),
    # [v @ MR | v @ MI] = [Re, +/-Im] of fft2(tile, norm='ortho') flattened.
    kh = np.arange(ph)
    kw = np.arange(pw)
    ang_h = 2.0 * np.pi * np.outer(kh, kh) / ph
    ang_w = 2.0 * np.pi * np.outer(kw, kw) / pw
    Ch, Sh = np.cos(ang_h), np.sin(ang_h)
    Cw, Sw = np.cos(ang_w), np.sin(ang_w)
    scale = 1.0 / float(np.sqrt(ph * pw))
    MR = (np.kron(Ch, Cw) - np.kron(Sh, Sw)) * scale
    MI = (np.kron(Ch, Sw) + np.kron(Sh, Cw)) * scale      # sign irrelevant (squared)
    dft = np.zeros((Lp, 2 * Lp), np.float32)
    dft[:L, :L] = MR
    dft[:L, Lp:Lp + L] = MI
    dft = jnp.asarray(dft)

    kernel = functools.partial(_ffl_kernel, lp=Lp, alpha=float(alpha),
                               log_matrix=bool(log_matrix))

    # Explicit VMEM budget: 2 inputs x 2 buffers x (TB, Lp) + DFT matrix (+out).
    vmem_bytes = (2 * 2 * TB * Lp + 2 * Lp * 2 * Lp + 2 * 128) * 4
    vmem_limit = int(min(max(2 * vmem_bytes, 8 << 20), 60 << 20))

    partials = pl.pallas_call(
        kernel,
        out_shape=jax.ShapeDtypeStruct((G, 128), jnp.float32),
        grid_spec=pltpu.PrefetchScalarGridSpec(
            num_scalar_prefetch=0,
            grid=(G,),
            in_specs=[
                pl.BlockSpec((TB, Lp), lambda g: (g, 0)),        # pred rows
                pl.BlockSpec((TB, Lp), lambda g: (g, 0)),        # target rows
                pl.BlockSpec((Lp, 2 * Lp), lambda g: (0, 0)),    # DFT matrix
            ],
            out_specs=pl.BlockSpec((1, 128), lambda g: (g, 0)),
        ),
        compiler_params=pltpu.CompilerParams(
            dimension_semantics=("parallel",),
            vmem_limit_bytes=vmem_limit),
    )(p, t, dft)

    total = jnp.sum(partials[:, 0])
    n_elem = B * ph * pw
    return (total / jnp.float32(n_elem)) * jnp.float32(loss_weight)


def _ffl_reference(pred, target, *, loss_weight=1.0, alpha=1.0,
                   patch_factor=1, log_matrix=False):
    """Pure-JAX reference mirroring the PyTorch module (defaults)."""
    N, C, H, W = pred.shape
    pf = patch_factor
    ph, pw = H // pf, W // pf

    def to_freq(x):
        y = x.reshape(N, C, pf, ph, pf, pw).transpose(0, 2, 4, 1, 3, 5)
        y = y.reshape(N, pf * pf, C, ph, pw)
        f = jnp.fft.fft2(y, norm='ortho')
        return jnp.stack([f.real, f.imag], -1)

    pfreq = to_freq(pred.astype(jnp.float32))
    tfreq = to_freq(target.astype(jnp.float32))
    tmp = (pfreq - tfreq) ** 2
    dist = tmp[..., 0] + tmp[..., 1]
    mat = jnp.sqrt(dist) ** alpha
    if log_matrix:
        mat = jnp.log(mat + 1.0)
    mat = mat / jnp.max(mat, axis=(-2, -1), keepdims=True)
    mat = jnp.where(jnp.isnan(mat), 0.0, mat)
    mat = jnp.clip(mat, 0.0, 1.0)
    return jnp.mean(mat * dist) * loss_weight


if __name__ == "__main__":
    key = jax.random.PRNGKey(0)
    k1, k2 = jax.random.split(key)
    pred = jax.random.normal(k1, (2, 4, 16, 16), dtype=jnp.float32)
    target = jax.random.normal(k2, (2, 4, 16, 16), dtype=jnp.float32)

    loss = focal_frequency_loss(pred, target)
    loss = jax.block_until_ready(loss)

    ref = jax.block_until_ready(_ffl_reference(pred, target))
    np.testing.assert_allclose(np.asarray(loss), np.asarray(ref),
                               rtol=2e-2, atol=1e-4)
    print("KERNEL_OK")
</pallas_src>

<mosaic_0001>
module attributes {stable_mosaic.version = 11 : i64} {
  func.func @_ffl_kernel(%arg0: i32, %arg1: memref<8x256xf32, #tpu.memory_space<vmem>>, %arg2: memref<8x256xf32, #tpu.memory_space<vmem>>, %arg3: memref<256x512xf32, #tpu.memory_space<vmem>>, %arg4: memref<1x128xf32, #tpu.memory_space<vmem>>) attributes {dimension_semantics = [#tpu.dimension_semantics<parallel>], iteration_bounds = array<i64: 1>, scalar_prefetch = 0 : i64, scratch_operands = 0 : i64, tpu.core_type = #tpu.core_type<tc>, window_params = [{transform_indices = @transform_0, window_bounds = array<i64: 8, 256>}, {transform_indices = @transform_1, window_bounds = array<i64: 8, 256>}, {pipeline_mode = #tpu.pipeline_mode<synchronous>, transform_indices = @transform_2, window_bounds = array<i64: 256, 512>}, {transform_indices = @transform_3, window_bounds = array<i64: 1, 128>}]} {
    %c0 = arith.constant 0 : index
    %c0_0 = arith.constant 0 : index
    %0 = vector.load %arg1[%c0, %c0_0] : memref<8x256xf32, #tpu.memory_space<vmem>>, vector<8x256xf32>
    %c0_1 = arith.constant 0 : index
    %c0_2 = arith.constant 0 : index
    %1 = vector.load %arg2[%c0_1, %c0_2] : memref<8x256xf32, #tpu.memory_space<vmem>>, vector<8x256xf32>
    %2 = arith.subf %0, %1 : vector<8x256xf32>
    %c0_3 = arith.constant 0 : index
    %c0_4 = arith.constant 0 : index
    %3 = vector.load %arg3[%c0_3, %c0_4] : memref<256x512xf32, #tpu.memory_space<vmem>>, vector<256x512xf32>
    %cst = arith.constant dense<0.000000e+00> : vector<8x512xf32>
    %4 = tpu.matmul %2, %3, %cst {dimension_numbers = #tpu.dot_dimension_numbers<[1], [0], [0], [1], [0, 0, 1, 1], [], []>} : vector<8x256xf32>, vector<256x512xf32>, vector<8x512xf32> -> vector<8x512xf32>
    %5 = vector.extract_strided_slice %4 {offsets = [0, 0], sizes = [8, 256], strides = [1, 1]} : vector<8x512xf32> to vector<8x256xf32>
    %6 = vector.extract_strided_slice %4 {offsets = [0, 256], sizes = [8, 256], strides = [1, 1]} : vector<8x512xf32> to vector<8x256xf32>
    %7 = arith.mulf %5, %5 : vector<8x256xf32>
    %8 = arith.mulf %6, %6 : vector<8x256xf32>
    %9 = arith.addf %7, %8 : vector<8x256xf32>
    %10 = math.sqrt %9 : vector<8x256xf32>
    %cst_5 = arith.constant dense<0xFF800000> : vector<8xf32>
    %11 = vector.multi_reduction <maximumf>, %10, %cst_5 [1] : vector<8x256xf32> to vector<8xf32>
    %12 = vector.shape_cast %11 : vector<8xf32> to vector<8x1xf32>
    %13 = arith.mulf %10, %9 : vector<8x256xf32>
    %cst_6 = arith.constant dense<0.000000e+00> : vector<8xf32>
    %14 = vector.multi_reduction <add>, %13, %cst_6 [1] : vector<8x256xf32> to vector<8xf32>
    %15 = vector.shape_cast %14 : vector<8xf32> to vector<8x1xf32>
    %cst_7 = arith.constant 0.000000e+00 : f32
    %16 = vector.broadcast %cst_7 : f32 to vector<8x1xf32>
    %17 = arith.cmpf ogt, %12, %16 : vector<8x1xf32>
    %18 = tpu.reciprocal %12 {approx = true} : vector<8x1xf32> -> vector<8x1xf32>
    %19 = arith.mulf %15, %18 : vector<8x1xf32>
    %cst_8 = arith.constant 0.000000e+00 : f32
    %20 = vector.broadcast %cst_8 : f32 to vector<8x1xf32>
    %21 = arith.select %17, %19, %20 : vector<8x1xi1>, vector<8x1xf32>
    %cst_9 = arith.constant 0.000000e+00 : f32
    %22 = vector.broadcast %cst_9 : f32 to vector<1x128xf32>
    %23 = vector.shape_cast %21 : vector<8x1xf32> to vector<1x8x1xf32>
    %cst_10 = arith.constant dense<0.000000e+00> : vector<1xf32>
    %24 = vector.multi_reduction <add>, %23, %cst_10 [1, 2] : vector<1x8x1xf32> to vector<1xf32>
    %25 = vector.shape_cast %24 : vector<1xf32> to vector<1x1x1xf32>
    %26 = vector.extract %25[0, 0, 0] : f32 from vector<1x1x1xf32>
    %27 = vector.broadcast %26 : f32 to vector<1x128xf32>
    %28 = arith.addf %22, %27 : vector<1x128xf32>
    %c0_11 = arith.constant 0 : index
    %c0_12 = arith.constant 0 : index
    %29 = vector.load %arg4[%c0_11, %c0_12] : memref<1x128xf32, #tpu.memory_space<vmem>>, vector<1x128xf32>
    tpu.vector_store %arg4[%c0_11, %c0_12], %28 {strides = array<i32>} : memref<1x128xf32, #tpu.memory_space<vmem>>, vector<1x128xf32>,
    return
  }
  func.func @transform_0(%arg0: i32) -> (i32, i32) {
    %c0_i32 = arith.constant 0 : i32
    %c0_i32_0 = arith.constant 0 : i32
    return %arg0, %c0_i32 : i32, i32
  }
  func.func @transform_1(%arg0: i32) -> (i32, i32) {
    %c0_i32 = arith.constant 0 : i32
    %c0_i32_0 = arith.constant 0 : i32
    return %arg0, %c0_i32 : i32, i32
  }
  func.func @transform_2(%arg0: i32) -> (i32, i32) {
    %c0_i32 = arith.constant 0 : i32
    %c0_i32_0 = arith.constant 0 : i32
    %c0_i32_1 = arith.constant 0 : i32
    return %c0_i32, %c0_i32_0 : i32, i32
  }
  func.func @transform_3(%arg0: i32) -> (i32, i32) {
    %c0_i32 = arith.constant 0 : i32
    %c0_i32_0 = arith.constant 0 : i32
    return %arg0, %c0_i32 : i32, i32
  }
}

</mosaic_0001>

<llo_original>
// kernel: tpu_custom_call.1
$region0: #{tpu_custom_call.1}
  #allocation0 [shape = 'u32[]', space=smem, size = 0x4, offset = 0x4, fixed_abs, tag = 'smem constant byte address 0x4 - core index']
  #allocation1 [shape = 'u32[144,128]{1,0:T(1,128)}', space=vmem, size = 0x12000, scoped, tag = 'internal scratch']
  %s0 = inlined_call_operand.hbm [shape: f32[8,256], index: 0, kind: input, shape index: {}]
  %s1 = inlined_call_operand.hbm [shape: f32[8,256], index: 1, kind: input, shape index: {}]
  %s2 = inlined_call_operand.hbm [shape: f32[256,512], index: 2, kind: input, shape index: {}]
  %s3 = inlined_call_operand.hbm [shape: f32[1,128], index: 3, kind: output, shape index: {}]
  %s4 = sld [smem:[#allocation0]]
  $region34: #{tpu_custom_call.1} parent=0
    _
  %s6 = ssub.s32 1, %s4
  %s7 = scalar_select 0, %s6, %s4
  $region1: #{tpu_custom_call.1} parent=0
    #allocation2 [shape = 'u8[8192]{0}', space=vmem, size = 0x2000, scoped, tag = 'input window, operand 0, single buffered']
    #allocation3 [shape = 's32[1]{0}', space=sflag, size = 0x4, scoped, tag = 'scoped memory for tpu_custom_call.1']
    #allocation4 [shape = 's32[1]{0}', space=sflag, size = 0x4, scoped, tag = 'scoped memory for tpu_custom_call.1']
    #allocation5 [shape = 'u8[8192]{0}', space=vmem, size = 0x2000, scoped, tag = 'input window, operand 1, single buffered']
    #allocation6 [shape = 's32[1]{0}', space=sflag, size = 0x4, scoped, tag = 'scoped memory for tpu_custom_call.1']
    #allocation7 [shape = 'u8[524288]{0}', space=vmem, size = 0x80000, scoped, tag = 'input window, operand 2, single buffered']
    #allocation8 [shape = 'u8[512]{0}', space=vmem, size = 0x400, scoped, tag = 'output window, operand 0, single buffered']
    %8 = vsyncpa [#allocation3], 0
    %9 = vsyncpa [#allocation6], 0
    %10 = vsyncpa [#allocation4], 0
    // Predicated region
    $region2: #{tpu_custom_call.1} parent=1 // pred_check
      _
    $region3: #{tpu_custom_call.1} parent=1 // pred_check_branch
      %12 = sbr.rel (0) target = $region5
    $region4: #{tpu_custom_call.1} parent=1 // pred_region
      %s14 = ssub.s32 256, 256
      %15 = vsyncadd [#allocation3], %s14
      %s17 = sshll.u32 [#allocation2], 4
      %s18 = int_to_ptr.vmem [resolvable:$true] %s17
      %20 = dma.hbm_to_vmem [thread:$0]  %s0, 256, %s18, [#allocation3]
    $region5: #{tpu_custom_call.1} parent=1 // pred_fallthru
      _
    // Predicated region
    $region6: #{tpu_custom_call.1} parent=1 // pred_check
      _
    $region7: #{tpu_custom_call.1} parent=1 // pred_check_branch
      %22 = sbr.rel (0) target = $region9
    $region8: #{tpu_custom_call.1} parent=1 // pred_region
      %s24 = ssub.s32 256, 256
      %25 = vsyncadd [#allocation6], %s24
      %s27 = sshll.u32 [#allocation5], 4
      %s28 = int_to_ptr.vmem [resolvable:$true] %s27
      %30 = dma.hbm_to_vmem [thread:$0]  %s1, 256, %s28, [#allocation6]
    $region9: #{tpu_custom_call.1} parent=1 // pred_fallthru
      _
    // Predicated region
    $region10: #{tpu_custom_call.1} parent=1 // pred_check
      _
    $region11: #{tpu_custom_call.1} parent=1 // pred_check_branch
      %32 = sbr.rel (0) target = $region13
    $region12: #{tpu_custom_call.1} parent=1 // pred_region
      %s34 = ssub.s32 16384, 16384
      %35 = vsyncadd [#allocation6], %s34
      %s36 = sshll.u32 [#allocation7], 4
      %s37 = int_to_ptr.vmem [resolvable:$true] %s36
      %42 = dma.hbm_to_vmem [thread:$0]  %s2, 16384, %s37, [#allocation6], 512, 512, 32
    $region13: #{tpu_custom_call.1} parent=1 // pred_fallthru
      _
    // Predicated region
    $region14: #{tpu_custom_call.1} parent=1 // pred_check
      _
    $region15: #{tpu_custom_call.1} parent=1 // pred_check_branch
      %44 = sbr.rel (0) target = $region17
    $region16: #{tpu_custom_call.1} parent=1 // pred_region
      %45 = dma.done [#allocation3], 256
    $region17: #{tpu_custom_call.1} parent=1 // pred_fallthru
      _
    // Predicated region
    $region18: #{tpu_custom_call.1} parent=1 // pred_check
      _
    $region19: #{tpu_custom_call.1} parent=1 // pred_check_branch
      %47 = sbr.rel (0) target = $region21
    $region20: #{tpu_custom_call.1} parent=1 // pred_region
      %48 = dma.done [#allocation6], 256
    $region21: #{tpu_custom_call.1} parent=1 // pred_fallthru
      _
    // Predicated region
    $region22: #{tpu_custom_call.1} parent=1 // pred_check
      _
    $region23: #{tpu_custom_call.1} parent=1 // pred_check_branch
      %50 = sbr.rel (0) target = $region25
    $region24: #{tpu_custom_call.1} parent=1 // pred_region
      %51 = dma.done [#allocation6], 16384
    $region25: #{tpu_custom_call.1} parent=1 // pred_fallthru
      _
    %v52 = vld [vmem:[#allocation2] sm:$0xff]
    %v53 = vld [vmem:[#allocation2 + $0x8] sm:$0xff]
    %v54 = vld [vmem:[#allocation5] sm:$0xff]
    %v55 = vld [vmem:[#allocation5 + $0x8] sm:$0xff]
    %v56 = vsub.f32 %v52, %v54
    %v57 = vsub.f32 %v53, %v55
    %v58 = vld [vmem:[#allocation7] sm:$0xff]
    %v59 = vld [vmem:[#allocation7 + $0x8] sm:$0xff]
    %v60 = vld [vmem:[#allocation7 + $0x10] sm:$0xff]
    %v61 = vld [vmem:[#allocation7 + $0x18] sm:$0xff]
    %v62 = vld [vmem:[#allocation7 + $0x20] sm:$0xff]
    %v63 = vld [vmem:[#allocation7 + $0x28] sm:$0xff]
    %v64 = vld [vmem:[#allocation7 + $0x30] sm:$0xff]
    %v65 = vld [vmem:[#allocation7 + $0x38] sm:$0xff]
    %v66 = vld [vmem:[#allocation7 + $0x40] sm:$0xff]
    %v67 = vld [vmem:[#allocation7 + $0x48] sm:$0xff]
    %v68 = vld [vmem:[#allocation7 + $0x50] sm:$0xff]
    %v69 = vld [vmem:[#allocation7 + $0x58] sm:$0xff]
    %v70 = vld [vmem:[#allocation7 + $0x60] sm:$0xff]
    %v71 = vld [vmem:[#allocation7 + $0x68] sm:$0xff]
    %v72 = vld [vmem:[#allocation7 + $0x70] sm:$0xff]
    %v73 = vld [vmem:[#allocation7 + $0x78] sm:$0xff]
    %v74 = vld [vmem:[#allocation7 + $0x80] sm:$0xff]
    %v75 = vld [vmem:[#allocation7 + $0x88] sm:$0xff]
    %v76 = vld [vmem:[#allocation7 + $0x90] sm:$0xff]
    %v77 = vld [vmem:[#allocation7 + $0x98] sm:$0xff]
    %v78 = vld [vmem:[#allocation7 + $0xa0] sm:$0xff]
    %v79 = vld [vmem:[#allocation7 + $0xa8] sm:$0xff]
    %v80 = vld [vmem:[#allocation7 + $0xb0] sm:$0xff]
    %v81 = vld [vmem:[#allocation7 + $0xb8] sm:$0xff]
    %v82 = vld [vmem:[#allocation7 + $0xc0] sm:$0xff]
    %v83 = vld [vmem:[#allocation7 + $0xc8] sm:$0xff]
    %v84 = vld [vmem:[#allocation7 + $0xd0] sm:$0xff]
    %v85 = vld [vmem:[#allocation7 + $0xd8] sm:$0xff]
    %v86 = vld [vmem:[#allocation7 + $0xe0] sm:$0xff]
    %v87 = vld [vmem:[#allocation7 + $0xe8] sm:$0xff]
    %v88 = vld [vmem:[#allocation7 + $0xf0] sm:$0xff]
    %v89 = vld [vmem:[#allocation7 + $0xf8] sm:$0xff]
    %v90 = vld [vmem:[#allocation7 + $0x100] sm:$0xff]
    %v91 = vld [vmem:[#allocation7 + $0x108] sm:$0xff]
    %v92 = vld [vmem:[#allocation7 + $0x110] sm:$0xff]
    %v93 = vld [vmem:[#allocation7 + $0x118] sm:$0xff]
    %v94 = vld [vmem:[#allocation7 + $0x120] sm:$0xff]
    %v95 = vld [vmem:[#allocation7 + $0x128] sm:$0xff]
    %v96 = vld [vmem:[#allocation7 + $0x130] sm:$0xff]
    %v97 = vld [vmem:[#allocation7 + $0x138] sm:$0xff]
    %v98 = vld [vmem:[#allocation7 + $0x140] sm:$0xff]
    %v99 = vld [vmem:[#allocation7 + $0x148] sm:$0xff]
    %v100 = vld [vmem:[#allocation7 + $0x150] sm:$0xff]
    %v101 = vld [vmem:[#allocation7 + $0x158] sm:$0xff]
    %v102 = vld [vmem:[#allocation7 + $0x160] sm:$0xff]
    %v103 = vld [vmem:[#allocation7 + $0x168] sm:$0xff]
    %v104 = vld [vmem:[#allocation7 + $0x170] sm:$0xff]
    %v105 = vld [vmem:[#allocation7 + $0x178] sm:$0xff]
    %v106 = vld [vmem:[#allocation7 + $0x180] sm:$0xff]
    %v107 = vld [vmem:[#allocation7 + $0x188] sm:$0xff]
    %v108 = vld [vmem:[#allocation7 + $0x190] sm:$0xff]
    %v109 = vld [vmem:[#allocation7 + $0x198] sm:$0xff]
    %v110 = vld [vmem:[#allocation7 + $0x1a0] sm:$0xff]
    %v111 = vld [vmem:[#allocation7 + $0x1a8] sm:$0xff]
    %v112 = vld [vmem:[#allocation7 + $0x1b0] sm:$0xff]
    %v113 = vld [vmem:[#allocation7 + $0x1b8] sm:$0xff]
    %v114 = vld [vmem:[#allocation7 + $0x1c0] sm:$0xff]
    %v115 = vld [vmem:[#allocation7 + $0x1c8] sm:$0xff]
    %v116 = vld [vmem:[#allocation7 + $0x1d0] sm:$0xff]
    %v117 = vld [vmem:[#allocation7 + $0x1d8] sm:$0xff]
    %v118 = vld [vmem:[#allocation7 + $0x1e0] sm:$0xff]
    %v119 = vld [vmem:[#allocation7 + $0x1e8] sm:$0xff]
    %v120 = vld [vmem:[#allocation7 + $0x1f0] sm:$0xff]
    %v121 = vld [vmem:[#allocation7 + $0x1f8] sm:$0xff]
    %v122 = vld [vmem:[#allocation7 + $0x200] sm:$0xff]
    %v123 = vld [vmem:[#allocation7 + $0x208] sm:$0xff]
    %v124 = vld [vmem:[#allocation7 + $0x210] sm:$0xff]
    %v125 = vld [vmem:[#allocation7 + $0x218] sm:$0xff]
    %v126 = vld [vmem:[#allocation7 + $0x220] sm:$0xff]
    %v127 = vld [vmem:[#allocation7 + $0x228] sm:$0xff]
    %v128 = vld [vmem:[#allocation7 + $0x230] sm:$0xff]
    %v129 = vld [vmem:[#allocation7 + $0x238] sm:$0xff]
    %v130 = vld [vmem:[#allocation7 + $0x240] sm:$0xff]
    %v131 = vld [vmem:[#allocation7 + $0x248] sm:$0xff]
    %v132 = vld [vmem:[#allocation7 + $0x250] sm:$0xff]
    %v133 = vld [vmem:[#allocation7 + $0x258] sm:$0xff]
    %v134 = vld [vmem:[#allocation7 + $0x260] sm:$0xff]
    %v135 = vld [vmem:[#allocation7 + $0x268] sm:$0xff]
    %v136 = vld [vmem:[#allocation7 + $0x270] sm:$0xff]
    %v137 = vld [vmem:[#allocation7 + $0x278] sm:$0xff]
    %v138 = vld [vmem:[#allocation7 + $0x280] sm:$0xff]
    %v139 = vld [vmem:[#allocation7 + $0x288] sm:$0xff]
    %v140 = vld [vmem:[#allocation7 + $0x290] sm:$0xff]
    %v141 = vld [vmem:[#allocation7 + $0x298] sm:$0xff]
    %v142 = vld [vmem:[#allocation7 + $0x2a0] sm:$0xff]
    %v143 = vld [vmem:[#allocation7 + $0x2a8] sm:$0xff]
    %v144 = vld [vmem:[#allocation7 + $0x2b0] sm:$0xff]
    %v145 = vld [vmem:[#allocation7 + $0x2b8] sm:$0xff]
    %v146 = vld [vmem:[#allocation7 + $0x2c0] sm:$0xff]
    %v147 = vld [vmem:[#allocation7 + $0x2c8] sm:$0xff]
    %v148 = vld [vmem:[#allocation7 + $0x2d0] sm:$0xff]
    %v149 = vld [vmem:[#allocation7 + $0x2d8] sm:$0xff]
    %v150 = vld [vmem:[#allocation7 + $0x2e0] sm:$0xff]
    %v151 = vld [vmem:[#allocation7 + $0x2e8] sm:$0xff]
    %v152 = vld [vmem:[#allocation7 + $0x2f0] sm:$0xff]
    %v153 = vld [vmem:[#allocation7 + $0x2f8] sm:$0xff]
    %v154 = vld [vmem:[#allocation7 + $0x300] sm:$0xff]
    %v155 = vld [vmem:[#allocation7 + $0x308] sm:$0xff]
    %v156 = vld [vmem:[#allocation7 + $0x310] sm:$0xff]
    %v157 = vld [vmem:[#allocation7 + $0x318] sm:$0xff]
    %v158 = vld [vmem:[#allocation7 + $0x320] sm:$0xff]
    %v159 = vld [vmem:[#allocation7 + $0x328] sm:$0xff]
    %v160 = vld [vmem:[#allocation7 + $0x330] sm:$0xff]
    %v161 = vld [vmem:[#allocation7 + $0x338] sm:$0xff]
    %v162 = vld [vmem:[#allocation7 + $0x340] sm:$0xff]
    %v163 = vld [vmem:[#allocation7 + $0x348] sm:$0xff]
    %v164 = vld [vmem:[#allocation7 + $0x350] sm:$0xff]
    %v165 = vld [vmem:[#allocation7 + $0x358] sm:$0xff]
    %v166 = vld [vmem:[#allocation7 + $0x360] sm:$0xff]
    %v167 = vld [vmem:[#allocation7 + $0x368] sm:$0xff]
    %v168 = vld [vmem:[#allocation7 + $0x370] sm:$0xff]
    %v169 = vld [vmem:[#allocation7 + $0x378] sm:$0xff]
    %v170 = vld [vmem:[#allocation7 + $0x380] sm:$0xff]
    %v171 = vld [vmem:[#allocation7 + $0x388] sm:$0xff]
    %v172 = vld [vmem:[#allocation7 + $0x390] sm:$0xff]
    %v173 = vld [vmem:[#allocation7 + $0x398] sm:$0xff]
    %v174 = vld [vmem:[#allocation7 + $0x3a0] sm:$0xff]
    %v175 = vld [vmem:[#allocation7 + $0x3a8] sm:$0xff]
    %v176 = vld [vmem:[#allocation7 + $0x3b0] sm:$0xff]
    %v177 = vld [vmem:[#allocation7 + $0x3b8] sm:$0xff]
    %v178 = vld [vmem:[#allocation7 + $0x3c0] sm:$0xff]
    %v179 = vld [vmem:[#allocation7 + $0x3c8] sm:$0xff]
    %v180 = vld [vmem:[#allocation7 + $0x3d0] sm:$0xff]
    %v181 = vld [vmem:[#allocation7 + $0x3d8] sm:$0xff]
    %v182 = vld [vmem:[#allocation7 + $0x3e0] sm:$0xff]
    %v183 = vld [vmem:[#allocation7 + $0x3e8] sm:$0xff]
    %v184 = vld [vmem:[#allocation7 + $0x3f0] sm:$0xff]
    %v185 = vld [vmem:[#allocation7 + $0x3f8] sm:$0xff]
    %186 = vmatprep.subr.mxu0 %v59
    %187 = vmatpush1.msra.mxu0 %v58
    %188 = vmatprep.subr.mxu0 %v63
    %189 = vmatpush1.msra.mxu0 %v62
    %190 = vmatprep.subr.mxu0 %v67
    %191 = vmatpush1.msra.mxu0 %v66
    %192 = vmatprep.subr.mxu0 %v71
    %193 = vmatpush1.msra.mxu0 %v70
    %194 = vmatprep.subr.mxu0 %v75
    %195 = vmatpush1.msra.mxu0 %v74
    %196 = vmatprep.subr.mxu0 %v79
    %197 = vmatpush1.msra.mxu0 %v78
    %198 = vmatprep.subr.mxu0 %v83
    %199 = vmatpush1.msra.mxu0 %v82
    %200 = vmatprep.subr.mxu0 %v87
    %201 = vmatpush1.msra.mxu0 %v86
    %202 = vmatprep.subr.mxu0 %v91
    %203 = vmatpush1.msra.mxu0 %v90
    %204 = vmatprep.subr.mxu0 %v95
    %205 = vmatpush1.msra.mxu0 %v94
    %206 = vmatprep.subr.mxu0 %v99
    %207 = vmatpush1.msra.mxu0 %v98
    %208 = vmatprep.subr.mxu0 %v103
    %209 = vmatpush1.msra.mxu0 %v102
    %210 = vmatprep.subr.mxu0 %v107
    %211 = vmatpush1.msra.mxu0 %v106
    %212 = vmatprep.subr.mxu0 %v111
    %213 = vmatpush1.msra.mxu0 %v110
    %214 = vmatprep.subr.mxu0 %v115
    %215 = vmatpush1.msra.mxu0 %v114
    %216 = vmatprep.subr.mxu0 %v119
    %217 = vmatpush1.msra.mxu0 %v118
    %218 = vmatprep.subr.mxu0 %v123
    %219 = vmatpush1.msra.mxu0 %v122
    %220 = vmatprep.subr.mxu0 %v127
    %221 = vmatpush1.msra.mxu0 %v126
    %222 = vmatprep.subr.mxu0 %v131
    %223 = vmatpush1.msra.mxu0 %v130
    %224 = vmatprep.subr.mxu0 %v135
    %225 = vmatpush1.msra.mxu0 %v134
    %226 = vmatprep.subr.mxu0 %v139
    %227 = vmatpush1.msra.mxu0 %v138
    %228 = vmatprep.subr.mxu0 %v143
    %229 = vmatpush1.msra.mxu0 %v142
    %230 = vmatprep.subr.mxu0 %v147
    %231 = vmatpush1.msra.mxu0 %v146
    %232 = vmatprep.subr.mxu0 %v151
    %233 = vmatpush1.msra.mxu0 %v150
    %234 = vmatprep.subr.mxu0 %v155
    %235 = vmatpush1.msra.mxu0 %v154
    %236 = vmatprep.subr.mxu0 %v159
    %237 = vmatpush1.msra.mxu0 %v158
    %238 = vmatprep.subr.mxu0 %v163
    %239 = vmatpush1.msra.mxu0 %v162
    %240 = vmatprep.subr.mxu0 %v167
    %241 = vmatpush1.msra.mxu0 %v166
    %242 = vmatprep.subr.mxu0 %v171
    %243 = vmatpush1.msra.mxu0 %v170
    %244 = vmatprep.subr.mxu0 %v175
    %245 = vmatpush1.msra.mxu0 %v174
    %246 = vmatprep.subr.mxu0 %v179
    %247 = vmatpush1.msra.mxu0 %v178
    %248 = vmatprep.subr.mxu0 %v183
    %249 = vmatpush1.msra.mxu0 %v182
    %250 = vmatprep.mubr.f32.mxu0 %v57
    %251 = vmatmul.mubr.f32.gmra.mrb[0].mxu0 %v56
    %v252 = vpop.f32.mrb[0].mxu0
    %v253 = vadd.f32 0.0, %v252
    %v254 = vpop.f32.mrb[0].mxu0
    %v255 = vadd.f32 0.0, %v254
    %256 = vdwg.mxu0
    %257 = vmatprep.subr.mxu0 %v61
    %258 = vmatpush1.msra.mxu0 %v60
    %259 = vmatprep.subr.mxu0 %v65
    %260 = vmatpush1.msra.mxu0 %v64
    %261 = vmatprep.subr.mxu0 %v69
    %262 = vmatpush1.msra.mxu0 %v68
    %263 = vmatprep.subr.mxu0 %v73
    %264 = vmatpush1.msra.mxu0 %v72
    %265 = vmatprep.subr.mxu0 %v77
    %266 = vmatpush1.msra.mxu0 %v76
    %267 = vmatprep.subr.mxu0 %v81
    %268 = vmatpush1.msra.mxu0 %v80
    %269 = vmatprep.subr.mxu0 %v85
    %270 = vmatpush1.msra.mxu0 %v84
    %271 = vmatprep.subr.mxu0 %v89
    %272 = vmatpush1.msra.mxu0 %v88
    %273 = vmatprep.subr.mxu0 %v93
    %274 = vmatpush1.msra.mxu0 %v92
    %275 = vmatprep.subr.mxu0 %v97
    %276 = vmatpush1.msra.mxu0 %v96
    %277 = vmatprep.subr.mxu0 %v101
    %278 = vmatpush1.msra.mxu0 %v100
    %279 = vmatprep.subr.mxu0 %v105
    %280 = vmatpush1.msra.mxu0 %v104
    %281 = vmatprep.subr.mxu0 %v109
    %282 = vmatpush1.msra.mxu0 %v108
    %283 = vmatprep.subr.mxu0 %v113
    %284 = vmatpush1.msra.mxu0 %v112
    %285 = vmatprep.subr.mxu0 %v117
    %286 = vmatpush1.msra.mxu0 %v116
    %287 = vmatprep.subr.mxu0 %v121
    %288 = vmatpush1.msra.mxu0 %v120
    %289 = vmatprep.subr.mxu0 %v125
    %290 = vmatpush1.msra.mxu0 %v124
    %291 = vmatprep.subr.mxu0 %v129
    %292 = vmatpush1.msra.mxu0 %v128
    %293 = vmatprep.subr.mxu0 %v133
    %294 = vmatpush1.msra.mxu0 %v132
    %295 = vmatprep.subr.mxu0 %v137
    %296 = vmatpush1.msra.mxu0 %v136
    %297 = vmatprep.subr.mxu0 %v141
    %298 = vmatpush1.msra.mxu0 %v140
    %299 = vmatprep.subr.mxu0 %v145
    %300 = vmatpush1.msra.mxu0 %v144
    %301 = vmatprep.subr.mxu0 %v149
    %302 = vmatpush1.msra.mxu0 %v148
    %303 = vmatprep.subr.mxu0 %v153
    %304 = vmatpush1.msra.mxu0 %v152
    %305 = vmatprep.subr.mxu0 %v157
    %306 = vmatpush1.msra.mxu0 %v156
    %307 = vmatprep.subr.mxu0 %v161
    %308 = vmatpush1.msra.mxu0 %v160
    %309 = vmatprep.subr.mxu0 %v165
    %310 = vmatpush1.msra.mxu0 %v164
    %311 = vmatprep.subr.mxu0 %v169
    %312 = vmatpush1.msra.mxu0 %v168
    %313 = vmatprep.subr.mxu0 %v173
    %314 = vmatpush1.msra.mxu0 %v172
    %315 = vmatprep.subr.mxu0 %v177
    %316 = vmatpush1.msra.mxu0 %v176
    %317 = vmatprep.subr.mxu0 %v181
    %318 = vmatpush1.msra.mxu0 %v180
    %319 = vmatprep.subr.mxu0 %v185
    %320 = vmatpush1.msra.mxu0 %v184
    %321 = vmatprep.mubr.f32.mxu0 %v57
    %322 = vmatmul.mubr.f32.gmra.mrb[0].mxu0 %v56
    %v323 = vpop.f32.mrb[0].mxu0
    %v324 = vadd.f32 0.0, %v323
    %v325 = vpop.f32.mrb[0].mxu0
    %v326 = vadd.f32 0.0, %v325
    %327 = vdwg.mxu0
    %v328 = vmul.f32 %v253, %v253
    %v329 = vmul.f32 %v255, %v255
    %v330 = vmul.f32 %v324, %v324
    %v331 = vmul.f32 %v326, %v326
    %v332 = vadd.f32 %v328, %v330
    %v333 = vadd.f32 %v329, %v331
    %v334 = vrsqrt.pop %v332
    %v335 = vmul.f32 %v332, %v334
    %vm336 = vcmp.eq.f32.partialorder %v332, inf
    %v337 = vsel %vm336, %v332, %v335
    %vm338 = vcmp.eq.f32.partialorder %v332, 0.0
    %v339 = vand.u32 %v332, 2147483648
    %v340 = vsel %vm338, %v339, %v337
    %v341 = vrsqrt.pop %v333
    %v342 = vmul.f32 %v333, %v341
    %vm343 = vcmp.eq.f32.partialorder %v333, inf
    %v344 = vsel %vm343, %v333, %v342
    %vm345 = vcmp.eq.f32.partialorder %v333, 0.0
    %v346 = vand.u32 %v333, 2147483648
    %v347 = vsel %vm345, %v346, %v344
    %v348 = vmax.f32 %v340, %v347
    %349 = vmax.xlane.f32.xlu0 %v348
    %v350 = vpop.xlane.xlu0 %349
    %v351 = vmul.f32 %v340, %v332
    %v352 = vmul.f32 %v347, %v333
    %v353 = vadd.f32 %v351, %v352
    %354 = vadd.xlane.f32.xlu0 %v353
    %v355 = vpop.xlane.xlu0 %354
    %vm356 = vcmp.gt.f32.partialorder %v350, 0.0
    %v357 = vrcp.pop %v350
    %v358 = vmul.f32 %v355, %v357
    %v359 = vsel %vm356, %v358, 0.0
    %vm360 = vcmask 7168
    %v361 = vsel %vm360, %v359, 0.0
    %362 = vadd.xlane.f32.xlu0 %v361
    %v363 = vpop.xlane.xlu0 %362
    %v364 = vrot.slane %v363, 4
    %v365 = vadd.f32 %v363, %v364
    %v366 = vrot.slane %v365, 2
    %v367 = vadd.f32 %v365, %v366
    %v368 = vrot.slane %v367, 1
    %v369 = vadd.f32 %v367, %v368
    %s370 = vtos %v369
    %v371 = vstv %s370
    %v372 = vadd.f32 %v371, 0.0
    %373 = vst [vmem:[#allocation8] sm:$0x1] %v372
    // Predicated region
    $region26: #{tpu_custom_call.1} parent=1 // pred_check
      _
    $region27: #{tpu_custom_call.1} parent=1 // pred_check_branch
      %375 = sbr.rel (0) target = $region29
    $region28: #{tpu_custom_call.1} parent=1 // pred_region
      %s377 = ssub.s32 16, 16
      %378 = vsyncadd [#allocation4], %s377
      %s380 = sshll.u32 [#allocation8], 4
      %s381 = int_to_ptr.vmem [resolvable:$true] %s380
      %383 = dma.vmem_to_hbm [thread:$0]  %s381, 16, %s3, [#allocation4]
    $region29: #{tpu_custom_call.1} parent=1 // pred_fallthru
      _
    // Predicated region
    $region30: #{tpu_custom_call.1} parent=1 // pred_check
      _
    $region31: #{tpu_custom_call.1} parent=1 // pred_check_branch
      %385 = sbr.rel (0) target = $region33
    $region32: #{tpu_custom_call.1} parent=1 // pred_region
      %386 = dma.done [#allocation4], 16
    $region33: #{tpu_custom_call.1} parent=1 // pred_fallthru
      _
    %387 = vsyncpa [#allocation3], 1
    %388 = vsyncpa [#allocation6], 1
    %389 = vsyncpa [#allocation4], 1

</llo_original>
